<compile_context>
chip_gen: v7x
topology: tpu7x:2x2x1
jax: 0.10.0
libtpu: 0.0.40
codegen_flags: <defaults>
</compile_context>

<pallas_src>
import functools

import jax
import jax.numpy as jnp
from jax.experimental import pallas as pl
from jax.experimental.pallas import tpu as pltpu


def _fused_mlp_kernel(*refs, n_layers: int):
    """refs = (x_ref, w0, b0, w1, b1, ..., w_{L-1}, b_{L-1}, o_ref).

    Chains matmul + bias (+ ReLU on all but the last layer) entirely in VMEM.
    Dot operands are cast to the weight dtype (bf16) for the MXU; accumulation,
    bias add and ReLU are kept in f32.
    """
    x_ref = refs[0]
    o_ref = refs[-1]
    wb_refs = refs[1:-1]

    h = x_ref[...].astype(jnp.float32)
    for i in range(n_layers):
        w = wb_refs[2 * i][...]
        b = wb_refs[2 * i + 1][...].astype(jnp.float32)   # (1, N) — broadcasts over rows
        h = jnp.dot(h.astype(w.dtype), w, preferred_element_type=jnp.float32) + b
        if i != n_layers - 1:
            h = jnp.maximum(h, 0.0)                        # ReLU in f32 on the VPU
    o_ref[...] = h.astype(o_ref.dtype)


def _round_up(a: int, m: int) -> int:
    return ((a + m - 1) // m) * m


def _cost_estimate(m, k, n_classes, x2, flat):
    flops = 0
    bytes_accessed = x2.size * x2.dtype.itemsize + m * n_classes * x2.dtype.itemsize
    for i in range(0, len(flat), 2):
        w, b = flat[i], flat[i + 1]
        flops += 2 * m * w.shape[0] * w.shape[1]
        bytes_accessed += w.size * w.dtype.itemsize + b.size * b.dtype.itemsize
    return pl.CostEstimate(flops=int(flops), transcendentals=0,
                           bytes_accessed=int(bytes_accessed))


def mlp_forward(x, params, n_in_features, *, tm_max=4096, gridless_max_rows=1024):
    """Forward pass: x.view(-1, n_in) -> [Linear+ReLU]*H -> Linear, fully fused."""
    x2 = x.reshape(-1, n_in_features)
    M, K = x2.shape
    n_layers = len(params)
    n_classes = params[-1][0].shape[1]

    flat = []
    for w, b in params:
        flat.append(w)                                     # (in, out), bf16
        flat.append(b.reshape(1, -1).astype(jnp.float32))  # (1, out), f32

    kernel = functools.partial(_fused_mlp_kernel, n_layers=n_layers)
    cost = _cost_estimate(M, K, n_classes, x2, flat)

    if M <= gridless_max_rows:
        # Small batch: single gridless kernel, everything whole-array in VMEM.
        vmem = pl.BlockSpec(memory_space=pltpu.MemorySpace.VMEM)
        return pl.pallas_call(
            kernel,
            out_shape=jax.ShapeDtypeStruct((M, n_classes), x2.dtype),
            in_specs=[vmem] * (1 + len(flat)),
            out_specs=vmem,
            cost_estimate=cost,
        )(x2, *flat)

    # Large batch: tile rows only. Ensure >= 2 grid steps on the "parallel" axis
    # so both v7x TensorCores are engaged; weights/biases stay resident (same
    # block every step). Ragged last block is masked by Pallas — no pad / slice.
    assert tm_max % 8 == 0, "row tile must be a multiple of the f32 sublane (8)"
    tm = min(tm_max, _round_up(pl.cdiv(M, 2), 8))
    grid_m = pl.cdiv(M, tm)

    param_specs = [pl.BlockSpec(p.shape, lambda i: (0, 0)) for p in flat]
    return pl.pallas_call(
        kernel,
        out_shape=jax.ShapeDtypeStruct((M, n_classes), x2.dtype),
        grid=(grid_m,),
        in_specs=[pl.BlockSpec((tm, K), lambda i: (i, 0))] + param_specs,
        out_specs=pl.BlockSpec((tm, n_classes), lambda i: (i, 0)),
        compiler_params=pltpu.CompilerParams(
            dimension_semantics=("parallel",),   # megacore sharding on v7x
        ),
        cost_estimate=cost,
    )(x2, *flat)


def init_mlp_params(key, n_in_features, n_classes, hidden_sizes,
                    weight_dtype=jnp.bfloat16, bias_dtype=jnp.float32):
    """Deterministic init mirroring nn.Linear default (uniform +-1/sqrt(fan_in)).

    Weights stored as (in_features, out_features), bf16 for the MXU; biases f32.
    """
    params = []
    fan_in = n_in_features
    dims = list(hidden_sizes) + [n_classes]
    for n_out in dims:
        key, kw, kb = jax.random.split(key, 3)
        bound = 1.0 / (fan_in ** 0.5)
        w = jax.random.uniform(kw, (fan_in, n_out), jnp.float32, -bound, bound)
        b = jax.random.uniform(kb, (n_out,), bias_dtype, -bound, bound)
        params.append((w.astype(weight_dtype), b))
        fan_in = n_out
    return params


if __name__ == "__main__":
    # Module config: MLP(n_in_features=32, n_classes=8, hidden_sizes=[64, 32])
    n_in_features = 32
    n_classes = 8
    hidden_sizes = [64, 32]

    key = jax.random.PRNGKey(0)
    key, kx1, kx2, kx3, kx4 = jax.random.split(key, 5)
    params = init_mlp_params(key, n_in_features, n_classes, hidden_sizes)

    def ref_forward(x):
        # Same math as the kernel: bf16 dot operands, f32 accumulate / bias / ReLU.
        h = x.reshape(-1, n_in_features).astype(jnp.float32)
        for i, (w, b) in enumerate(params):
            h = jnp.dot(h.astype(w.dtype), w, preferred_element_type=jnp.float32)
            h = h + b.astype(jnp.float32)
            if i != len(params) - 1:
                h = jnp.maximum(h, 0.0)
        return h

    def check(x, out):
        ref = ref_forward(x)
        assert out.shape == ref.shape, (out.shape, ref.shape)
        assert jnp.allclose(out, ref, atol=1e-3, rtol=1e-3)

    # Case 1: tiny batch -> single fused gridless kernel. 4*2*16 = 128 -> (4, 32).
    x_small = jax.random.normal(kx1, (4, 2, 16), dtype=jnp.float32)
    out_small = jax.block_until_ready(mlp_forward(x_small, params, n_in_features))
    check(x_small, out_small)

    # Case 2: tiled "parallel" path with an uneven tail, no pad/slice:
    # M=80, tm=32 -> grid of 3, last block ragged (16 real rows of 32).
    x_big = jax.random.normal(kx2, (40, 4, 16), dtype=jnp.float32)
    out_big = jax.block_until_ready(
        mlp_forward(x_big, params, n_in_features, tm_max=32, gridless_max_rows=16))
    check(x_big, out_big)

    # Case 3: tiled path where tm_max caps the tile: M=18, tm=8 -> grid of 3,
    # last block ragged (2 real rows of 8).
    x_mid = jax.random.normal(kx3, (9, 4, 16), dtype=jnp.float32)
    out_mid = jax.block_until_ready(
        mlp_forward(x_mid, params, n_in_features, tm_max=8, gridless_max_rows=8))
    check(x_mid, out_mid)

    # Case 4: tiled path where tm is derived from cdiv(M, 2) so grid_m == 2
    # (both v7x TensorCores get a step): M=48 -> tm=24, grid of 2, even split.
    x_two = jax.random.normal(kx4, (24, 2, 32), dtype=jnp.float32)
    out_two = jax.block_until_ready(
        mlp_forward(x_two, params, n_in_features, gridless_max_rows=16))
    check(x_two, out_two)

    print("KERNEL_OK")
</pallas_src>

<mosaic_0001>
module attributes {stable_mosaic.version = 11 : i64} {
  func.func @_fused_mlp_kernel(%arg0: memref<4x32xf32, #tpu.memory_space<vmem>>, %arg1: memref<32x64xbf16, #tpu.memory_space<vmem>>, %arg2: memref<1x64xf32, #tpu.memory_space<vmem>>, %arg3: memref<64x32xbf16, #tpu.memory_space<vmem>>, %arg4: memref<1x32xf32, #tpu.memory_space<vmem>>, %arg5: memref<32x8xbf16, #tpu.memory_space<vmem>>, %arg6: memref<1x8xf32, #tpu.memory_space<vmem>>, %arg7: memref<4x8xf32, #tpu.memory_space<vmem>>) attributes {dimension_semantics = [], scalar_prefetch = 0 : i64, scratch_operands = 0 : i64, tpu.core_type = #tpu.core_type<tc>} {
    %c0 = arith.constant 0 : index
    %c0_0 = arith.constant 0 : index
    %0 = vector.load %arg0[%c0, %c0_0] : memref<4x32xf32, #tpu.memory_space<vmem>>, vector<4x32xf32>
    %c0_1 = arith.constant 0 : index
    %c0_2 = arith.constant 0 : index
    %1 = vector.load %arg1[%c0_1, %c0_2] : memref<32x64xbf16, #tpu.memory_space<vmem>>, vector<32x64xbf16>
    %c0_3 = arith.constant 0 : index
    %c0_4 = arith.constant 0 : index
    %2 = vector.load %arg2[%c0_3, %c0_4] : memref<1x64xf32, #tpu.memory_space<vmem>>, vector<1x64xf32>
    %3 = arith.truncf %0 : vector<4x32xf32> to vector<4x32xbf16>
    %cst = arith.constant dense<0.000000e+00> : vector<4x64xf32>
    %4 = tpu.matmul %3, %1, %cst {dimension_numbers = #tpu.dot_dimension_numbers<[1], [0], [0], [1], [0, 0, 1, 1], [], []>} : vector<4x32xbf16>, vector<32x64xbf16>, vector<4x64xf32> -> vector<4x64xf32>
    %5 = vector.broadcast %2 : vector<1x64xf32> to vector<4x64xf32>
    %6 = arith.addf %4, %5 : vector<4x64xf32>
    %cst_5 = arith.constant 0.000000e+00 : f32
    %7 = vector.broadcast %cst_5 : f32 to vector<4x64xf32>
    %8 = arith.maximumf %6, %7 : vector<4x64xf32>
    %c0_6 = arith.constant 0 : index
    %c0_7 = arith.constant 0 : index
    %9 = vector.load %arg3[%c0_6, %c0_7] : memref<64x32xbf16, #tpu.memory_space<vmem>>, vector<64x32xbf16>
    %c0_8 = arith.constant 0 : index
    %c0_9 = arith.constant 0 : index
    %10 = vector.load %arg4[%c0_8, %c0_9] : memref<1x32xf32, #tpu.memory_space<vmem>>, vector<1x32xf32>
    %11 = arith.truncf %8 : vector<4x64xf32> to vector<4x64xbf16>
    %cst_10 = arith.constant dense<0.000000e+00> : vector<4x32xf32>
    %12 = tpu.matmul %11, %9, %cst_10 {dimension_numbers = #tpu.dot_dimension_numbers<[1], [0], [0], [1], [0, 0, 1, 1], [], []>} : vector<4x64xbf16>, vector<64x32xbf16>, vector<4x32xf32> -> vector<4x32xf32>
    %13 = vector.broadcast %10 : vector<1x32xf32> to vector<4x32xf32>
    %14 = arith.addf %12, %13 : vector<4x32xf32>
    %cst_11 = arith.constant 0.000000e+00 : f32
    %15 = vector.broadcast %cst_11 : f32 to vector<4x32xf32>
    %16 = arith.maximumf %14, %15 : vector<4x32xf32>
    %c0_12 = arith.constant 0 : index
    %c0_13 = arith.constant 0 : index
    %17 = vector.load %arg5[%c0_12, %c0_13] : memref<32x8xbf16, #tpu.memory_space<vmem>>, vector<32x8xbf16>
    %c0_14 = arith.constant 0 : index
    %c0_15 = arith.constant 0 : index
    %18 = vector.load %arg6[%c0_14, %c0_15] : memref<1x8xf32, #tpu.memory_space<vmem>>, vector<1x8xf32>
    %19 = arith.truncf %16 : vector<4x32xf32> to vector<4x32xbf16>
    %cst_16 = arith.constant dense<0.000000e+00> : vector<4x8xf32>
    %20 = tpu.matmul %19, %17, %cst_16 {dimension_numbers = #tpu.dot_dimension_numbers<[1], [0], [0], [1], [0, 0, 1, 1], [], []>} : vector<4x32xbf16>, vector<32x8xbf16>, vector<4x8xf32> -> vector<4x8xf32>
    %21 = vector.broadcast %18 : vector<1x8xf32> to vector<4x8xf32>
    %22 = arith.addf %20, %21 : vector<4x8xf32>
    %c0_17 = arith.constant 0 : index
    %c0_18 = arith.constant 0 : index
    %23 = vector.load %arg7[%c0_17, %c0_18] : memref<4x8xf32, #tpu.memory_space<vmem>>, vector<4x8xf32>
    tpu.vector_store %arg7[%c0_17, %c0_18], %22 {strides = array<i32>} : memref<4x8xf32, #tpu.memory_space<vmem>>, vector<4x8xf32>,
    return
  }
}

</mosaic_0001>

<llo_original>
// kernel: tpu_custom_call.1
$region0: #{tpu_custom_call.1}
  #allocation0 [shape = 'u32[]', space=smem, size = 0x4, offset = 0x4, fixed_abs, tag = 'smem constant byte address 0x4 - core index']
  #allocation1 [shape = 'u32[144,128]{1,0:T(1,128)}', space=vmem, size = 0x12000, scoped, tag = 'internal scratch']
  %s0 = inlined_call_operand.vmem [shape: f32[4,32], index: 0, kind: input, shape index: {}]
  %s1 = inlined_call_operand.vmem [shape: bf16[32,64], index: 1, kind: input, shape index: {}]
  %s2 = inlined_call_operand.vmem [shape: f32[1,64], index: 2, kind: input, shape index: {}]
  %s3 = inlined_call_operand.vmem [shape: bf16[64,32], index: 3, kind: input, shape index: {}]
  %s4 = inlined_call_operand.vmem [shape: f32[1,32], index: 4, kind: input, shape index: {}]
  %s5 = inlined_call_operand.vmem [shape: bf16[32,8], index: 5, kind: input, shape index: {}]
  %s6 = inlined_call_operand.vmem [shape: f32[1,8], index: 6, kind: input, shape index: {}]
  %s7 = inlined_call_operand.hbm [shape: f32[4,8], index: 7, kind: output, shape index: {}]
  %s8 = sld [smem:[#allocation0]]
  $region38: #{tpu_custom_call.1} parent=0
    _
  %s10 = ssub.s32 1, %s8
  %s11 = scalar_select 0, %s10, %s8
  $region1: #{tpu_custom_call.1} parent=0
    #allocation2 [shape = 'u8[2048]{0}', space=vmem, size = 0x800, scoped, tag = 'output window, operand 0, single buffered']
    #allocation3 [shape = 's32[1]{0}', space=sflag, size = 0x4, scoped, tag = 'scoped memory for tpu_custom_call.1']
    %12 = vsyncpa [#allocation3], 0
    // Predicated region
    $region2: #{tpu_custom_call.1} parent=1 // pred_check
      _
    $region3: #{tpu_custom_call.1} parent=1 // pred_check_branch
      %14 = sbr.rel (0) target = $region5
    $region4: #{tpu_custom_call.1} parent=1 // pred_region
      _
    $region5: #{tpu_custom_call.1} parent=1 // pred_fallthru
      _
    // Predicated region
    $region6: #{tpu_custom_call.1} parent=1 // pred_check
      _
    $region7: #{tpu_custom_call.1} parent=1 // pred_check_branch
      %16 = sbr.rel (0) target = $region9
    $region8: #{tpu_custom_call.1} parent=1 // pred_region
      _
    $region9: #{tpu_custom_call.1} parent=1 // pred_fallthru
      _
    // Predicated region
    $region10: #{tpu_custom_call.1} parent=1 // pred_check
      _
    $region11: #{tpu_custom_call.1} parent=1 // pred_check_branch
      %18 = sbr.rel (0) target = $region13
    $region12: #{tpu_custom_call.1} parent=1 // pred_region
      _
    $region13: #{tpu_custom_call.1} parent=1 // pred_fallthru
      _
    // Predicated region
    $region14: #{tpu_custom_call.1} parent=1 // pred_check
      _
    $region15: #{tpu_custom_call.1} parent=1 // pred_check_branch
      %20 = sbr.rel (0) target = $region17
    $region16: #{tpu_custom_call.1} parent=1 // pred_region
      _
    $region17: #{tpu_custom_call.1} parent=1 // pred_fallthru
      _
    // Predicated region
    $region18: #{tpu_custom_call.1} parent=1 // pred_check
      _
    $region19: #{tpu_custom_call.1} parent=1 // pred_check_branch
      %22 = sbr.rel (0) target = $region21
    $region20: #{tpu_custom_call.1} parent=1 // pred_region
      _
    $region21: #{tpu_custom_call.1} parent=1 // pred_fallthru
      _
    // Predicated region
    $region22: #{tpu_custom_call.1} parent=1 // pred_check
      _
    $region23: #{tpu_custom_call.1} parent=1 // pred_check_branch
      %24 = sbr.rel (0) target = $region25
    $region24: #{tpu_custom_call.1} parent=1 // pred_region
      _
    $region25: #{tpu_custom_call.1} parent=1 // pred_fallthru
      _
    // Predicated region
    $region26: #{tpu_custom_call.1} parent=1 // pred_check
      _
    $region27: #{tpu_custom_call.1} parent=1 // pred_check_branch
      %26 = sbr.rel (0) target = $region29
    $region28: #{tpu_custom_call.1} parent=1 // pred_region
      _
    $region29: #{tpu_custom_call.1} parent=1 // pred_fallthru
      _
    %v28 = vld [vmem:[%s0] sm:$0xf]
    %v29 = vld [vmem:[%s1] sm:$0xf]
    %v30 = vld [vmem:[%s1 + $0x4] sm:$0xf]
    %v31 = vld [vmem:[%s1 + $0x8] sm:$0xf]
    %v32 = vld [vmem:[%s1 + $0xc] sm:$0xf]
    %v33 = vld [vmem:[%s2] sm:$0x1]
    %v34 = vpack.c.bf16 %v28, %v28
    %v36 = vlaneseq
    %v37 = vshrl.u32 %v36, 7
    %v38 = vsub.s32 0, %v37
    %v39 = vrot.slane %v33, %v38
    %v45 = vunpack.c.l.b16 %v29
    %v46 = vunpack.c.l.b16 %v30
    %v47 = vunpack.c.l.b16 %v31
    %v48 = vunpack.c.l.b16 %v32
    %v49 = vpack.c.b16 %v46, %v45
    %v50 = vpack.c.b16 %v48, %v47
    %vm53 = vcmask 261120
    %v55 = vsel %vm53, %v34, 0
    %57 = vmatprep.subr.bf16.mxu0 0
    %58 = vmatpush1.bf16.msra.mxu0 %v49
    %59 = vmatprep.subr.bf16.mxu0 0
    %60 = vmatpush1.bf16.msra.mxu0 %v50
    %61 = vmatprep.subr.bf16.mxu0 0
    %62 = vmatpush1.bf16.msra.mxu0 0
    %63 = vmatprep.subr.bf16.mxu0 0
    %64 = vmatpush1.bf16.msra.mxu0 0
    %65 = vmatprep.subr.bf16.mxu0 0
    %66 = vmatpush1.bf16.msra.mxu0 0
    %67 = vmatprep.subr.bf16.mxu0 0
    %68 = vmatpush1.bf16.msra.mxu0 0
    %69 = vmatprep.subr.bf16.mxu0 0
    %70 = vmatpush1.bf16.msra.mxu0 0
    %71 = vmatprep.subr.bf16.mxu0 0
    %72 = vmatpush1.bf16.msra.mxu0 0
    %73 = vmatprep.subr.bf16.mxu0 0
    %74 = vmatpush1.bf16.msra.mxu0 0
    %75 = vmatprep.subr.bf16.mxu0 0
    %76 = vmatpush1.bf16.msra.mxu0 0
    %77 = vmatprep.subr.bf16.mxu0 0
    %78 = vmatpush1.bf16.msra.mxu0 0
    %79 = vmatprep.subr.bf16.mxu0 0
    %80 = vmatpush1.bf16.msra.mxu0 0
    %81 = vmatprep.subr.bf16.mxu0 0
    %82 = vmatpush1.bf16.msra.mxu0 0
    %83 = vmatprep.subr.bf16.mxu0 0
    %84 = vmatpush1.bf16.msra.mxu0 0
    %85 = vmatprep.subr.bf16.mxu0 0
    %86 = vmatpush1.bf16.msra.mxu0 0
    %87 = vmatprep.subr.bf16.mxu0 0
    %88 = vmatpush1.bf16.msra.mxu0 0
    %89 = vmatprep.mubr.bf16.mxu0 0
    %90 = vmatmul.mubr.bf16.gmra.mrb[0].mxu0 %v55
    %v91 = vpop.f32.mrb[0].mxu0
    %v92 = vadd.f32 %v39, %v91
    %v93 = vpop.f32.mrb[0].mxu0
    %v94 = vpop.f32.mrb[0].mxu0
    %v95 = vpop.f32.mrb[0].mxu0
    %96 = vdwg.mxu0
    %v97 = vmax.f32 %v92, 0.0
    %v98 = vld [vmem:[%s3] sm:$0xf]
    %v99 = vld [vmem:[%s3 + $0x4] sm:$0xf]
    %v100 = vld [vmem:[%s3 + $0x8] sm:$0xf]
    %v101 = vld [vmem:[%s3 + $0xc] sm:$0xf]
    %v102 = vld [vmem:[%s3 + $0x10] sm:$0xf]
    %v103 = vld [vmem:[%s3 + $0x14] sm:$0xf]
    %v104 = vld [vmem:[%s3 + $0x18] sm:$0xf]
    %v105 = vld [vmem:[%s3 + $0x1c] sm:$0xf]
    %v106 = vld [vmem:[%s4] sm:$0x1]
    %v107 = vpack.c.bf16 %v97, %v97
    %v109 = vlaneseq
    %v110 = vshrl.u32 %v109, 7
    %v111 = vsub.s32 0, %v110
    %v112 = vrot.slane %v106, %v111
    %v122 = vunpack.c.l.b16 %v98
    %v123 = vunpack.c.l.b16 %v99
    %v124 = vunpack.c.l.b16 %v100
    %v125 = vunpack.c.l.b16 %v101
    %v126 = vunpack.c.l.b16 %v102
    %v127 = vunpack.c.l.b16 %v103
    %v128 = vunpack.c.l.b16 %v104
    %v129 = vunpack.c.l.b16 %v105
    %v130 = vpack.c.b16 %v123, %v122
    %v131 = vpack.c.b16 %v125, %v124
    %v132 = vpack.c.b16 %v127, %v126
    %v133 = vpack.c.b16 %v129, %v128
    %vm138 = vcmask 523264
    %v140 = vsel %vm138, %v107, 0
    %142 = vmatprep.subr.bf16.mxu0 0
    %143 = vmatpush1.bf16.msra.mxu0 %v130
    %144 = vmatprep.subr.bf16.mxu0 0
    %145 = vmatpush1.bf16.msra.mxu0 %v131
    %146 = vmatprep.subr.bf16.mxu0 0
    %147 = vmatpush1.bf16.msra.mxu0 %v132
    %148 = vmatprep.subr.bf16.mxu0 0
    %149 = vmatpush1.bf16.msra.mxu0 %v133
    %150 = vmatprep.subr.bf16.mxu0 0
    %151 = vmatpush1.bf16.msra.mxu0 0
    %152 = vmatprep.subr.bf16.mxu0 0
    %153 = vmatpush1.bf16.msra.mxu0 0
    %154 = vmatprep.subr.bf16.mxu0 0
    %155 = vmatpush1.bf16.msra.mxu0 0
    %156 = vmatprep.subr.bf16.mxu0 0
    %157 = vmatpush1.bf16.msra.mxu0 0
    %158 = vmatprep.subr.bf16.mxu0 0
    %159 = vmatpush1.bf16.msra.mxu0 0
    %160 = vmatprep.subr.bf16.mxu0 0
    %161 = vmatpush1.bf16.msra.mxu0 0
    %162 = vmatprep.subr.bf16.mxu0 0
    %163 = vmatpush1.bf16.msra.mxu0 0
    %164 = vmatprep.subr.bf16.mxu0 0
    %165 = vmatpush1.bf16.msra.mxu0 0
    %166 = vmatprep.subr.bf16.mxu0 0
    %167 = vmatpush1.bf16.msra.mxu0 0
    %168 = vmatprep.subr.bf16.mxu0 0
    %169 = vmatpush1.bf16.msra.mxu0 0
    %170 = vmatprep.subr.bf16.mxu0 0
    %171 = vmatpush1.bf16.msra.mxu0 0
    %172 = vmatprep.subr.bf16.mxu0 0
    %173 = vmatpush1.bf16.msra.mxu0 0
    %174 = vmatprep.mubr.bf16.mxu0 0
    %175 = vmatmul.mubr.bf16.gmra.mrb[0].mxu0 %v140
    %v176 = vpop.f32.mrb[0].mxu0
    %v177 = vadd.f32 %v112, %v176
    %v178 = vpop.f32.mrb[0].mxu0
    %v179 = vpop.f32.mrb[0].mxu0
    %v180 = vpop.f32.mrb[0].mxu0
    %181 = vdwg.mxu0
    %v182 = vmax.f32 %v177, 0.0
    %v183 = vld [vmem:[%s5] sm:$0xf]
    %v184 = vld [vmem:[%s5 + $0x4] sm:$0xf]
    %v185 = vld [vmem:[%s5 + $0x8] sm:$0xf]
    %v186 = vld [vmem:[%s5 + $0xc] sm:$0xf]
    %v187 = vld [vmem:[%s6] sm:$0x1]
    %v188 = vpack.c.bf16 %v182, %v182
    %v190 = vlaneseq
    %v191 = vshrl.u32 %v190, 7
    %v192 = vsub.s32 0, %v191
    %v193 = vrot.slane %v187, %v192
    %v199 = vunpack.c.l.b16 %v183
    %v200 = vunpack.c.l.b16 %v184
    %v201 = vunpack.c.l.b16 %v185
    %v202 = vunpack.c.l.b16 %v186
    %v203 = vpack.c.b16 %v200, %v199
    %v204 = vpack.c.b16 %v202, %v201
    %v208 = vsel %vm53, %v188, 0
    %210 = vmatprep.subr.bf16.mxu0 0
    %211 = vmatpush1.bf16.msra.mxu0 %v203
    %212 = vmatprep.subr.bf16.mxu0 0
    %213 = vmatpush1.bf16.msra.mxu0 %v204
    %214 = vmatprep.subr.bf16.mxu0 0
    %215 = vmatpush1.bf16.msra.mxu0 0
    %216 = vmatprep.subr.bf16.mxu0 0
    %217 = vmatpush1.bf16.msra.mxu0 0
    %218 = vmatprep.subr.bf16.mxu0 0
    %219 = vmatpush1.bf16.msra.mxu0 0
    %220 = vmatprep.subr.bf16.mxu0 0
    %221 = vmatpush1.bf16.msra.mxu0 0
    %222 = vmatprep.subr.bf16.mxu0 0
    %223 = vmatpush1.bf16.msra.mxu0 0
    %224 = vmatprep.subr.bf16.mxu0 0
    %225 = vmatpush1.bf16.msra.mxu0 0
    %226 = vmatprep.subr.bf16.mxu0 0
    %227 = vmatpush1.bf16.msra.mxu0 0
    %228 = vmatprep.subr.bf16.mxu0 0
    %229 = vmatpush1.bf16.msra.mxu0 0
    %230 = vmatprep.subr.bf16.mxu0 0
    %231 = vmatpush1.bf16.msra.mxu0 0
    %232 = vmatprep.subr.bf16.mxu0 0
    %233 = vmatpush1.bf16.msra.mxu0 0
    %234 = vmatprep.subr.bf16.mxu0 0
    %235 = vmatpush1.bf16.msra.mxu0 0
    %236 = vmatprep.subr.bf16.mxu0 0
    %237 = vmatpush1.bf16.msra.mxu0 0
    %238 = vmatprep.subr.bf16.mxu0 0
    %239 = vmatpush1.bf16.msra.mxu0 0
    %240 = vmatprep.subr.bf16.mxu0 0
    %241 = vmatpush1.bf16.msra.mxu0 0
    %242 = vmatprep.mubr.bf16.mxu0 0
    %243 = vmatmul.mubr.bf16.gmra.mrb[0].mxu0 %v208
    %v244 = vpop.f32.mrb[0].mxu0
    %v245 = vadd.f32 %v193, %v244
    %v246 = vpop.f32.mrb[0].mxu0
    %v247 = vpop.f32.mrb[0].mxu0
    %v248 = vpop.f32.mrb[0].mxu0
    %249 = vdwg.mxu0
    %vm250 = vcmask 60416
    %251 = vst.msk [vmem:[#allocation2] sm:$0xf] %vm250, %v245
    // Predicated region
    $region30: #{tpu_custom_call.1} parent=1 // pred_check
      _
    $region31: #{tpu_custom_call.1} parent=1 // pred_check_branch
      %253 = sbr.rel (0) target = $region33
    $region32: #{tpu_custom_call.1} parent=1 // pred_region
      %s255 = ssub.s32 64, 64
      %256 = vsyncadd [#allocation3], %s255
      %s258 = sshll.u32 [#allocation2], 4
      %s259 = int_to_ptr.vmem [resolvable:$true] %s258
      %261 = dma.vmem_to_hbm [thread:$0]  %s259, 64, %s7, [#allocation3]
    $region33: #{tpu_custom_call.1} parent=1 // pred_fallthru
      _
    // Predicated region
    $region34: #{tpu_custom_call.1} parent=1 // pred_check
      _
    $region35: #{tpu_custom_call.1} parent=1 // pred_check_branch
      %263 = sbr.rel (0) target = $region37
    $region36: #{tpu_custom_call.1} parent=1 // pred_region
      %264 = dma.done [#allocation3], 64
    $region37: #{tpu_custom_call.1} parent=1 // pred_fallthru
      _
    %265 = vsyncpa [#allocation3], 1

</llo_original>
